<compile_context>
chip_gen: v7x
topology: tpu7x:2x2x1
jax: 0.10.0
libtpu: 0.0.40
codegen_flags: <defaults>
</compile_context>

<pallas_src>
import functools

import jax
import jax.numpy as jnp
from jax.experimental import pallas as pl
from jax.experimental.pallas import tpu as pltpu


# ----------------------------------------------------------------------------
# Chip-aware tuning
# ----------------------------------------------------------------------------
def _chip_config():
    """Returns (block_target_bytes, vmem_limit_bytes, num_tensorcores, bf16_native)."""
    kind = ""
    try:
        kind = jax.devices()[0].device_kind.lower()
    except Exception:
        pass

    is_v7 = ("v7" in kind) or ("7x" in kind)
    multi_tc = is_v7 or ("v4" in kind)      # chips exposing 2 TCs per device
    small_vmem = is_v7                       # v7x: 64 MiB VMEM per core

    try:  # prefer the real VMEM capacity when the query is available
        vmem_cap = getattr(pltpu.get_tpu_info(), "vmem_capacity_bytes", None)
        if vmem_cap is not None:
            small_vmem = vmem_cap <= (80 << 20)
    except Exception:
        pass

    if small_vmem:
        block_target, vmem_limit = 6 << 20, 48 << 20
    else:                                    # v5e / v6e: 128 MiB physical VMEM
        block_target, vmem_limit = 10 << 20, 64 << 20

    bf16_native = "v5" not in kind           # v5e has no bf16 VALU
    return block_target, vmem_limit, (2 if multi_tc else 1), bf16_native


# ----------------------------------------------------------------------------
# Kernels
# ----------------------------------------------------------------------------
def _gate_mlp(y, w1_ref, b1_ref, w2_ref, b2_ref):
    """Squeeze-excite MLP on the pooled vector, kept on the VPU (no MXU).

    y: (Bt, C) f32 -> sigmoid gate (Bt, C) f32.
    """
    h = jnp.sum(y[:, None, :] * w1_ref[...][None, :, :], axis=2) + b1_ref[...]
    h = jnp.maximum(h, 0.0)
    z = jnp.sum(h[:, None, :] * w2_ref[...][None, :, :], axis=2) + b2_ref[...]
    return jax.nn.sigmoid(z)


def _fused_kernel(inv_hw, native_mul,
                  x_ref, w1_ref, b1_ref, w2_ref, b2_ref, o_ref):
    """Single-pass path: pool + gate + scale on a (Bt, C, HW) slab."""
    # f32-accumulated reduce straight off the ref (no full-tile f32 copy).
    y = jnp.sum(x_ref[...], axis=2, dtype=jnp.float32) * inv_hw      # (Bt, C)
    g = _gate_mlp(y, w1_ref, b1_ref, w2_ref, b2_ref)                 # (Bt, C) f32
    if native_mul:
        o_ref[...] = x_ref[...] * g.astype(o_ref.dtype)[:, :, None]
    else:  # no bf16 VALU (v5e): widen, multiply, narrow
        o_ref[...] = (x_ref[...].astype(jnp.float32)
                      * g[:, :, None]).astype(o_ref.dtype)


def _pool_sum_kernel(hw, mask_last, x_ref, sum_ref):
    """Tiled pass 1: accumulate f32 channel sums over lane-dense HW tiles.

    The f32 accumulator is the resident output block (constant index along the
    'arbitrary' HW grid axis).  The iota/where edge mask only runs on the last
    tile (and only when HW does not divide the tile).
    """
    h = pl.program_id(1)
    last = pl.num_programs(1) - 1

    @pl.when(h == 0)
    def _():
        sum_ref[...] = jnp.zeros_like(sum_ref)

    if mask_last:
        @pl.when(h < last)
        def _():  # interior tiles: unmasked f32-accumulated reduce
            sum_ref[...] += jnp.sum(x_ref[...], axis=2,
                                    dtype=jnp.float32)[:, :, None]

        @pl.when(h == last)
        def _():  # edge tile only: mask lanes past the true HW extent
            blk = x_ref[...].astype(jnp.float32)
            t = blk.shape[-1]
            col = jax.lax.broadcasted_iota(jnp.int32, blk.shape, 2) + h * t
            blk = jnp.where(col < hw, blk, 0.0)
            sum_ref[...] += jnp.sum(blk, axis=2)[:, :, None]
    else:
        sum_ref[...] += jnp.sum(x_ref[...], axis=2,
                                dtype=jnp.float32)[:, :, None]


def _scale_kernel(native_mul, x_ref, g_ref, o_ref):
    """Tiled pass 2: lane-dense elementwise x * gate."""
    if native_mul:
        o_ref[...] = x_ref[...] * g_ref[...]
    else:
        o_ref[...] = (x_ref[...].astype(jnp.float32)
                      * g_ref[...]).astype(o_ref.dtype)


# ----------------------------------------------------------------------------
# Pure-JAX reference (mirrors the PyTorch module exactly)
# ----------------------------------------------------------------------------
def ca_layer_ref(x, w1, b1, w2, b2):
    y = jnp.mean(x, axis=(2, 3), keepdims=True)            # AdaptiveAvgPool2d(1)
    y = jnp.einsum("oc,bcij->boij", w1, y) + b1[None, :, None, None]
    y = jnp.maximum(y, 0.0)
    y = jnp.einsum("oc,bcij->boij", w2, y) + b2[None, :, None, None]
    y = jax.nn.sigmoid(y)
    return x * y


# ----------------------------------------------------------------------------
# Wrapper
# ----------------------------------------------------------------------------
def _largest_divisor_leq(n, cap):
    cap = max(1, min(n, cap))
    for d in range(cap, 0, -1):
        if n % d == 0:
            return d
    return 1


def _pick_hw_tile(hw, c, itemsize, budget_bytes, max_tile):
    """Lane-dense (multiple-of-128) HW tile within a per-block byte budget."""
    t = (budget_bytes // max(1, c * itemsize)) // 128 * 128
    t = max(128, min(t, max_tile))
    if t >= hw:
        return hw
    # Prefer a nearby divisor of HW (no edge tile -> no mask, no lane waste).
    for cand in range(t, max(t // 2, 128) - 1, -128):
        if hw % cand == 0:
            return cand
    return t


def ca_layer_pallas(x, w1, b1, w2, b2, *, hw_block=None, force_tiled=False,
                    donate_x=False):
    """Channel attention: x * sigmoid(W2 relu(W1 mean_hw(x) + b1) + b2).

    x: (B, C, H, W).  w1: (C//r, C), b1: (C//r,), w2: (C, C//r), b2: (C,).
    hw_block: optional spatial tile override for the tiled path; must be a
      multiple of 128 (or >= H*W).
    donate_x: alias x with the output (use only if the caller donates x).
    """
    B, C, H, W = x.shape
    HW = H * W
    Cr = w1.shape[0]

    block_target, vmem_limit, num_tc, bf16_native = _chip_config()

    x_flat = x.reshape(B, C, HW)
    b1_r = b1.reshape(1, Cr)
    b2_r = b2.reshape(1, C)
    inv_hw = 1.0 / float(HW)

    itemsize = jnp.dtype(x.dtype).itemsize
    per_batch_bytes = C * HW * itemsize
    native_mul = (x.dtype == jnp.float32) or bf16_native
    io_alias = {0: 0} if donate_x else {}

    use_fused = (per_batch_bytes <= block_target) and not force_tiled

    if use_fused:
        # Pack several batches per block to amortize the ~0.35us/step grid
        # overhead; only reserve >= num_tc grid steps on multi-TC chips.
        cap = max(1, block_target // max(1, per_batch_bytes))
        if num_tc > 1 and B >= num_tc:
            cap = min(cap, max(1, B // num_tc))
        bt = _largest_divisor_leq(B, cap)

        out_flat = pl.pallas_call(
            functools.partial(_fused_kernel, inv_hw, native_mul),
            out_shape=jax.ShapeDtypeStruct((B, C, HW), x.dtype),
            grid_spec=pltpu.PrefetchScalarGridSpec(
                num_scalar_prefetch=0,
                grid=(B // bt,),
                in_specs=[
                    pl.BlockSpec((bt, C, HW), lambda i: (i, 0, 0)),
                    pl.BlockSpec((Cr, C), lambda i: (0, 0)),
                    pl.BlockSpec((1, Cr), lambda i: (0, 0)),
                    pl.BlockSpec((C, Cr), lambda i: (0, 0)),
                    pl.BlockSpec((1, C), lambda i: (0, 0)),
                ],
                out_specs=pl.BlockSpec((bt, C, HW), lambda i: (i, 0, 0)),
            ),
            compiler_params=pltpu.CompilerParams(
                dimension_semantics=("parallel",),
                vmem_limit_bytes=vmem_limit),
            input_output_aliases=io_alias,
        )(x_flat, w1, b1_r, w2, b2_r)
        return out_flat.reshape(B, C, H, W)

    # ------------------------------------------------------------------ tiled
    if C * 128 * itemsize > block_target:
        # TODO(synk): add a C-tiled variant for extremely wide channel counts.
        return ca_layer_ref(x, w1, b1, w2, b2)

    if hw_block is not None:
        t_scale = t_pool = min(int(hw_block), HW)
    else:
        # Pass 2 double-buffers input AND output; pass 1 only the input, so it
        # gets ~2x the tile within the same VMEM budget.
        t_scale = _pick_hw_tile(HW, C, itemsize, block_target, 16384)
        t_pool = _pick_hw_tile(HW, C, itemsize, 2 * block_target, 32768)

    # ---- Pass 1: f32 channel sums.  On 2-TC chips with B == 1, split HW over
    # a size-2 parallel axis so both TensorCores stream the read.
    split = (B == 1 and num_tc >= 2 and t_pool < HW
             and HW % (num_tc * t_pool) == 0)
    if split:
        grp = num_tc
        n_pool = HW // (grp * t_pool)
        x_pool_map = lambda p, h: (0, 0, p * n_pool + h)
        mask_last = False
    else:
        grp = B
        n_pool = pl.cdiv(HW, t_pool)
        x_pool_map = lambda g, h: (g, 0, h)
        mask_last = (HW % t_pool) != 0

    sums = pl.pallas_call(
        functools.partial(_pool_sum_kernel, HW, mask_last),
        out_shape=jax.ShapeDtypeStruct((grp, C, 1), jnp.float32),
        grid_spec=pltpu.PrefetchScalarGridSpec(
            num_scalar_prefetch=0,
            grid=(grp, n_pool),
            in_specs=[pl.BlockSpec((1, C, t_pool), x_pool_map)],
            out_specs=pl.BlockSpec((1, C, 1), lambda g, h: (g, 0, 0)),
        ),
        compiler_params=pltpu.CompilerParams(
            dimension_semantics=("parallel", "arbitrary"),
            vmem_limit_bytes=vmem_limit),
    )(x_flat)

    # ---- Tiny gate MLP on the pooled (B, C) vector: negligible work, plain JAX.
    if split:
        y = jnp.sum(sums, axis=0).reshape(1, C) * inv_hw
    else:
        y = sums.reshape(B, C) * inv_hw
    hdn = jnp.maximum(y @ w1.T.astype(jnp.float32) + b1.astype(jnp.float32), 0.0)
    gate = jax.nn.sigmoid(hdn @ w2.T.astype(jnp.float32) + b2.astype(jnp.float32))
    gate = gate[:, :, None]
    gate = gate.astype(x.dtype) if native_mul else gate.astype(jnp.float32)

    # ---- Pass 2: fully parallel elementwise scale.
    n_scale = pl.cdiv(HW, t_scale)
    out_flat = pl.pallas_call(
        functools.partial(_scale_kernel, native_mul),
        out_shape=jax.ShapeDtypeStruct((B, C, HW), x.dtype),
        grid_spec=pltpu.PrefetchScalarGridSpec(
            num_scalar_prefetch=0,
            grid=(B, n_scale),
            in_specs=[
                pl.BlockSpec((1, C, t_scale), lambda b, h: (b, 0, h)),
                pl.BlockSpec((1, C, 1), lambda b, h: (b, 0, 0)),
            ],
            out_specs=pl.BlockSpec((1, C, t_scale), lambda b, h: (b, 0, h)),
        ),
        compiler_params=pltpu.CompilerParams(
            dimension_semantics=("parallel", "parallel"),
            vmem_limit_bytes=vmem_limit),
        input_output_aliases=io_alias,
    )(x_flat, gate)
    return out_flat.reshape(B, C, H, W)


# ----------------------------------------------------------------------------
# Self-test
# ----------------------------------------------------------------------------
if __name__ == "__main__":
    # Channels must be divisible by reduction=8.
    B, C, H, W = 2, 16, 16, 16
    reduction = 8
    Cr = C // reduction

    key = jax.random.PRNGKey(0)
    kx, k1, k2, k3, k4 = jax.random.split(key, 5)

    x = jax.random.normal(kx, (B, C, H, W), dtype=jnp.float32)
    # Conv2d 1x1 weights collapsed to 2-D.
    w1 = jax.random.normal(k1, (Cr, C), dtype=jnp.float32) * 0.1
    b1 = jax.random.normal(k2, (Cr,), dtype=jnp.float32) * 0.1
    w2 = jax.random.normal(k3, (C, Cr), dtype=jnp.float32) * 0.1
    b2 = jax.random.normal(k4, (C,), dtype=jnp.float32) * 0.1

    ref = ca_layer_ref(x, w1, b1, w2, b2)

    # Fused single-pass path (small image, batch-packed blocks).
    out_fused = jax.block_until_ready(ca_layer_pallas(x, w1, b1, w2, b2))
    assert out_fused.shape == (B, C, H, W)
    assert jnp.allclose(out_fused, ref, atol=1e-5, rtol=1e-5), "fused mismatch"

    # Tiled two-pass path, tile divides HW (no edge mask).
    out_tiled = jax.block_until_ready(
        ca_layer_pallas(x, w1, b1, w2, b2, force_tiled=True, hw_block=128))
    assert jnp.allclose(out_tiled, ref, atol=1e-5, rtol=1e-5), "tiled mismatch"

    # Tiled path with a ragged edge tile (HW = 400, tile = 128 -> masked last tile).
    x2 = jax.random.normal(kx, (1, C, 20, 20), dtype=jnp.float32)
    ref2 = ca_layer_ref(x2, w1, b1, w2, b2)
    out2 = jax.block_until_ready(
        ca_layer_pallas(x2, w1, b1, w2, b2, force_tiled=True, hw_block=128))
    assert jnp.allclose(out2, ref2, atol=1e-5, rtol=1e-5), "edge-mask mismatch"

    # Tiled path, B == 1 with HW divisible by 2*tile (exercises the v7x
    # two-TensorCore HW split in pass 1 when running on a 2-TC chip).
    x3 = jax.random.normal(kx, (1, C, 32, 32), dtype=jnp.float32)
    ref3 = ca_layer_ref(x3, w1, b1, w2, b2)
    out3 = jax.block_until_ready(
        ca_layer_pallas(x3, w1, b1, w2, b2, force_tiled=True, hw_block=128))
    assert jnp.allclose(out3, ref3, atol=1e-5, rtol=1e-5), "split mismatch"

    print("KERNEL_OK")
</pallas_src>

<mosaic_0001>
module attributes {stable_mosaic.version = 11 : i64} {
  func.func @_fused_kernel(%arg0: i32, %arg1: memref<2x16x256xf32, #tpu.memory_space<vmem>>, %arg2: memref<2x16xf32, #tpu.memory_space<vmem>>, %arg3: memref<1x2xf32, #tpu.memory_space<vmem>>, %arg4: memref<16x2xf32, #tpu.memory_space<vmem>>, %arg5: memref<1x16xf32, #tpu.memory_space<vmem>>, %arg6: memref<2x16x256xf32, #tpu.memory_space<vmem>>) attributes {dimension_semantics = [#tpu.dimension_semantics<parallel>], iteration_bounds = array<i64: 1>, scalar_prefetch = 0 : i64, scratch_operands = 0 : i64, tpu.core_type = #tpu.core_type<tc>, window_params = [{transform_indices = @transform_0, window_bounds = array<i64: 2, 16, 256>}, {pipeline_mode = #tpu.pipeline_mode<synchronous>, transform_indices = @transform_1, window_bounds = array<i64: 2, 16>}, {pipeline_mode = #tpu.pipeline_mode<synchronous>, transform_indices = @transform_2, window_bounds = array<i64: 1, 2>}, {pipeline_mode = #tpu.pipeline_mode<synchronous>, transform_indices = @transform_3, window_bounds = array<i64: 16, 2>}, {pipeline_mode = #tpu.pipeline_mode<synchronous>, transform_indices = @transform_4, window_bounds = array<i64: 1, 16>}, {transform_indices = @transform_5, window_bounds = array<i64: 2, 16, 256>}]} {
    %c0 = arith.constant 0 : index
    %c0_0 = arith.constant 0 : index
    %c0_1 = arith.constant 0 : index
    %0 = vector.load %arg1[%c0, %c0_0, %c0_1] : memref<2x16x256xf32, #tpu.memory_space<vmem>>, vector<2x16x256xf32>
    %cst = arith.constant dense<0.000000e+00> : vector<2x16xf32>
    %1 = vector.multi_reduction <add>, %0, %cst [2] : vector<2x16x256xf32> to vector<2x16xf32>
    %cst_2 = arith.constant 3.906250e-03 : f32
    %2 = vector.broadcast %cst_2 : f32 to vector<2x16xf32>
    %3 = arith.mulf %1, %2 : vector<2x16xf32>
    %4 = vector.shape_cast %3 : vector<2x16xf32> to vector<2x1x16xf32>
    %c0_3 = arith.constant 0 : index
    %c0_4 = arith.constant 0 : index
    %5 = vector.load %arg2[%c0_3, %c0_4] : memref<2x16xf32, #tpu.memory_space<vmem>>, vector<2x16xf32>
    %6 = vector.shape_cast %5 : vector<2x16xf32> to vector<1x2x16xf32>
    %7 = vector.broadcast %4 : vector<2x1x16xf32> to vector<2x2x16xf32>
    %8 = vector.broadcast %6 : vector<1x2x16xf32> to vector<2x2x16xf32>
    %9 = arith.mulf %7, %8 : vector<2x2x16xf32>
    %cst_5 = arith.constant dense<0.000000e+00> : vector<2x2xf32>
    %10 = vector.multi_reduction <add>, %9, %cst_5 [2] : vector<2x2x16xf32> to vector<2x2xf32>
    %c0_6 = arith.constant 0 : index
    %c0_7 = arith.constant 0 : index
    %11 = vector.load %arg3[%c0_6, %c0_7] : memref<1x2xf32, #tpu.memory_space<vmem>>, vector<1x2xf32>
    %12 = vector.broadcast %11 : vector<1x2xf32> to vector<2x2xf32>
    %13 = arith.addf %10, %12 : vector<2x2xf32>
    %cst_8 = arith.constant 0.000000e+00 : f32
    %14 = vector.broadcast %cst_8 : f32 to vector<2x2xf32>
    %15 = arith.maximumf %13, %14 : vector<2x2xf32>
    %16 = vector.shape_cast %15 : vector<2x2xf32> to vector<2x1x2xf32>
    %c0_9 = arith.constant 0 : index
    %c0_10 = arith.constant 0 : index
    %17 = vector.load %arg4[%c0_9, %c0_10] : memref<16x2xf32, #tpu.memory_space<vmem>>, vector<16x2xf32>
    %18 = vector.shape_cast %17 : vector<16x2xf32> to vector<1x16x2xf32>
    %19 = vector.broadcast %16 : vector<2x1x2xf32> to vector<2x16x2xf32>
    %20 = vector.broadcast %18 : vector<1x16x2xf32> to vector<2x16x2xf32>
    %21 = arith.mulf %19, %20 : vector<2x16x2xf32>
    %cst_11 = arith.constant dense<0.000000e+00> : vector<2x16xf32>
    %22 = vector.multi_reduction <add>, %21, %cst_11 [2] : vector<2x16x2xf32> to vector<2x16xf32>
    %c0_12 = arith.constant 0 : index
    %c0_13 = arith.constant 0 : index
    %23 = vector.load %arg5[%c0_12, %c0_13] : memref<1x16xf32, #tpu.memory_space<vmem>>, vector<1x16xf32>
    %24 = vector.broadcast %23 : vector<1x16xf32> to vector<2x16xf32>
    %25 = arith.addf %22, %24 : vector<2x16xf32>
    %26 = arith.negf %25 : vector<2x16xf32>
    %27 = math.exp %26 : vector<2x16xf32>
    %cst_14 = arith.constant 1.000000e+00 : f32
    %28 = vector.broadcast %cst_14 : f32 to vector<2x16xf32>
    %29 = arith.addf %28, %27 : vector<2x16xf32>
    %30 = arith.divf %28, %29 : vector<2x16xf32>
    %c0_15 = arith.constant 0 : index
    %c0_16 = arith.constant 0 : index
    %c0_17 = arith.constant 0 : index
    %31 = vector.load %arg1[%c0_15, %c0_16, %c0_17] : memref<2x16x256xf32, #tpu.memory_space<vmem>>, vector<2x16x256xf32>
    %32 = vector.shape_cast %30 : vector<2x16xf32> to vector<2x16x1xf32>
    %33 = vector.broadcast %32 : vector<2x16x1xf32> to vector<2x16x256xf32>
    %34 = arith.mulf %31, %33 : vector<2x16x256xf32>
    %c0_18 = arith.constant 0 : index
    %c0_19 = arith.constant 0 : index
    %c0_20 = arith.constant 0 : index
    %35 = vector.load %arg6[%c0_18, %c0_19, %c0_20] : memref<2x16x256xf32, #tpu.memory_space<vmem>>, vector<2x16x256xf32>
    tpu.vector_store %arg6[%c0_18, %c0_19, %c0_20], %34 {strides = array<i32>} : memref<2x16x256xf32, #tpu.memory_space<vmem>>, vector<2x16x256xf32>,
    return
  }
  func.func @transform_0(%arg0: i32) -> (i32, i32, i32) {
    %c0_i32 = arith.constant 0 : i32
    %c0_i32_0 = arith.constant 0 : i32
    %c0_i32_1 = arith.constant 0 : i32
    return %arg0, %c0_i32, %c0_i32_0 : i32, i32, i32
  }
  func.func @transform_1(%arg0: i32) -> (i32, i32) {
    %c0_i32 = arith.constant 0 : i32
    %c0_i32_0 = arith.constant 0 : i32
    %c0_i32_1 = arith.constant 0 : i32
    return %c0_i32, %c0_i32_0 : i32, i32
  }
  func.func @transform_2(%arg0: i32) -> (i32, i32) {
    %c0_i32 = arith.constant 0 : i32
    %c0_i32_0 = arith.constant 0 : i32
    %c0_i32_1 = arith.constant 0 : i32
    return %c0_i32, %c0_i32_0 : i32, i32
  }
  func.func @transform_3(%arg0: i32) -> (i32, i32) {
    %c0_i32 = arith.constant 0 : i32
    %c0_i32_0 = arith.constant 0 : i32
    %c0_i32_1 = arith.constant 0 : i32
    return %c0_i32, %c0_i32_0 : i32, i32
  }
  func.func @transform_4(%arg0: i32) -> (i32, i32) {
    %c0_i32 = arith.constant 0 : i32
    %c0_i32_0 = arith.constant 0 : i32
    %c0_i32_1 = arith.constant 0 : i32
    return %c0_i32, %c0_i32_0 : i32, i32
  }
  func.func @transform_5(%arg0: i32) -> (i32, i32, i32) {
    %c0_i32 = arith.constant 0 : i32
    %c0_i32_0 = arith.constant 0 : i32
    %c0_i32_1 = arith.constant 0 : i32
    return %arg0, %c0_i32, %c0_i32_0 : i32, i32, i32
  }
}

</mosaic_0001>

<llo_original>
// kernel: tpu_custom_call.1
$region0: #{tpu_custom_call.1}
  #allocation0 [shape = 'u32[]', space=smem, size = 0x4, offset = 0x4, fixed_abs, tag = 'smem constant byte address 0x4 - core index']
  #allocation1 [shape = 'u32[144,128]{1,0:T(1,128)}', space=vmem, size = 0x12000, scoped, tag = 'internal scratch']
  %s0 = inlined_call_operand.hbm [shape: f32[2,16,256], index: 0, kind: input, shape index: {}]
  %s1 = inlined_call_operand.hbm [shape: f32[2,16], index: 1, kind: input, shape index: {}]
  %s2 = inlined_call_operand.hbm [shape: f32[1,2], index: 2, kind: input, shape index: {}]
  %s3 = inlined_call_operand.hbm [shape: f32[16,2], index: 3, kind: input, shape index: {}]
  %s4 = inlined_call_operand.hbm [shape: f32[1,16], index: 4, kind: input, shape index: {}]
  %s5 = inlined_call_operand.hbm [shape: f32[2,16,256], index: 5, kind: output, shape index: {}]
  %s6 = sld [smem:[#allocation0]]
  $region50: #{tpu_custom_call.1} parent=0
    _
  %s8 = ssub.s32 1, %s6
  %s9 = scalar_select 0, %s8, %s6
  $region1: #{tpu_custom_call.1} parent=0
    #allocation2 [shape = 'u8[32768]{0}', space=vmem, size = 0x8000, scoped, tag = 'input window, operand 0, single buffered']
    #allocation3 [shape = 's32[1]{0}', space=sflag, size = 0x4, scoped, tag = 'scoped memory for tpu_custom_call.1']
    #allocation4 [shape = 's32[1]{0}', space=sflag, size = 0x4, scoped, tag = 'scoped memory for tpu_custom_call.1']
    #allocation5 [shape = 'u8[1024]{0}', space=vmem, size = 0x400, scoped, tag = 'input window, operand 1, single buffered']
    #allocation6 [shape = 's32[1]{0}', space=sflag, size = 0x4, scoped, tag = 'scoped memory for tpu_custom_call.1']
    #allocation7 [shape = 'u8[512]{0}', space=vmem, size = 0x400, scoped, tag = 'input window, operand 2, single buffered']
    #allocation8 [shape = 'u8[8192]{0}', space=vmem, size = 0x2000, scoped, tag = 'input window, operand 3, single buffered']
    #allocation9 [shape = 's32[1]{0}', space=sflag, size = 0x4, scoped, tag = 'scoped memory for tpu_custom_call.1']
    #allocation10 [shape = 'u8[512]{0}', space=vmem, size = 0x400, scoped, tag = 'input window, operand 4, single buffered']
    #allocation11 [shape = 'u8[32768]{0}', space=vmem, size = 0x8000, scoped, tag = 'output window, operand 0, single buffered']
    %10 = vsyncpa [#allocation3], 0
    %11 = vsyncpa [#allocation6], 0
    %12 = vsyncpa [#allocation9], 0
    %13 = vsyncpa [#allocation4], 0
    // Predicated region
    $region2: #{tpu_custom_call.1} parent=1 // pred_check
      _
    $region3: #{tpu_custom_call.1} parent=1 // pred_check_branch
      %15 = sbr.rel (0) target = $region5
    $region4: #{tpu_custom_call.1} parent=1 // pred_region
      %s17 = ssub.s32 1024, 1024
      %18 = vsyncadd [#allocation3], %s17
      %s19 = sshll.u32 [#allocation2], 4
      %s20 = int_to_ptr.vmem [resolvable:$true] %s19
      %25 = dma.hbm_to_vmem [thread:$0]  %s0, 1024, %s20, [#allocation3], 256, 256, 16
    $region5: #{tpu_custom_call.1} parent=1 // pred_fallthru
      _
    // Predicated region
    $region6: #{tpu_custom_call.1} parent=1 // pred_check
      _
    $region7: #{tpu_custom_call.1} parent=1 // pred_check_branch
      %27 = sbr.rel (0) target = $region9
    $region8: #{tpu_custom_call.1} parent=1 // pred_region
      %s29 = ssub.s32 32, 32
      %30 = vsyncadd [#allocation6], %s29
      %s32 = sshll.u32 [#allocation5], 4
      %s33 = int_to_ptr.vmem [resolvable:$true] %s32
      %35 = dma.hbm_to_vmem [thread:$0]  %s1, 32, %s33, [#allocation6]
    $region9: #{tpu_custom_call.1} parent=1 // pred_fallthru
      _
    // Predicated region
    $region10: #{tpu_custom_call.1} parent=1 // pred_check
      _
    $region11: #{tpu_custom_call.1} parent=1 // pred_check_branch
      %37 = sbr.rel (0) target = $region13
    $region12: #{tpu_custom_call.1} parent=1 // pred_region
      %s39 = ssub.s32 16, 16
      %40 = vsyncadd [#allocation6], %s39
      %s42 = sshll.u32 [#allocation7], 4
      %s43 = int_to_ptr.vmem [resolvable:$true] %s42
      %45 = dma.hbm_to_vmem [thread:$0]  %s2, 16, %s43, [#allocation6]
    $region13: #{tpu_custom_call.1} parent=1 // pred_fallthru
      _
    // Predicated region
    $region14: #{tpu_custom_call.1} parent=1 // pred_check
      _
    $region15: #{tpu_custom_call.1} parent=1 // pred_check_branch
      %47 = sbr.rel (0) target = $region17
    $region16: #{tpu_custom_call.1} parent=1 // pred_region
      %s49 = ssub.s32 256, 256
      %50 = vsyncadd [#allocation9], %s49
      %s51 = sshll.u32 [#allocation8], 4
      %s52 = int_to_ptr.vmem [resolvable:$true] %s51
      %57 = dma.hbm_to_vmem [thread:$0]  %s3, 256, %s52, [#allocation9], 128, 128, 8
    $region17: #{tpu_custom_call.1} parent=1 // pred_fallthru
      _
    // Predicated region
    $region18: #{tpu_custom_call.1} parent=1 // pred_check
      _
    $region19: #{tpu_custom_call.1} parent=1 // pred_check_branch
      %59 = sbr.rel (0) target = $region21
    $region20: #{tpu_custom_call.1} parent=1 // pred_region
      %s61 = ssub.s32 16, 16
      %62 = vsyncadd [#allocation9], %s61
      %s64 = sshll.u32 [#allocation10], 4
      %s65 = int_to_ptr.vmem [resolvable:$true] %s64
      %67 = dma.hbm_to_vmem [thread:$0]  %s4, 16, %s65, [#allocation9]
    $region21: #{tpu_custom_call.1} parent=1 // pred_fallthru
      _
    // Predicated region
    $region22: #{tpu_custom_call.1} parent=1 // pred_check
      _
    $region23: #{tpu_custom_call.1} parent=1 // pred_check_branch
      %69 = sbr.rel (0) target = $region25
    $region24: #{tpu_custom_call.1} parent=1 // pred_region
      %70 = dma.done [#allocation3], 1024
    $region25: #{tpu_custom_call.1} parent=1 // pred_fallthru
      _
    // Predicated region
    $region26: #{tpu_custom_call.1} parent=1 // pred_check
      _
    $region27: #{tpu_custom_call.1} parent=1 // pred_check_branch
      %72 = sbr.rel (0) target = $region29
    $region28: #{tpu_custom_call.1} parent=1 // pred_region
      %73 = dma.done [#allocation6], 32
    $region29: #{tpu_custom_call.1} parent=1 // pred_fallthru
      _
    // Predicated region
    $region30: #{tpu_custom_call.1} parent=1 // pred_check
      _
    $region31: #{tpu_custom_call.1} parent=1 // pred_check_branch
      %75 = sbr.rel (0) target = $region33
    $region32: #{tpu_custom_call.1} parent=1 // pred_region
      %76 = dma.done [#allocation6], 16
    $region33: #{tpu_custom_call.1} parent=1 // pred_fallthru
      _
    // Predicated region
    $region34: #{tpu_custom_call.1} parent=1 // pred_check
      _
    $region35: #{tpu_custom_call.1} parent=1 // pred_check_branch
      %78 = sbr.rel (0) target = $region37
    $region36: #{tpu_custom_call.1} parent=1 // pred_region
      %79 = dma.done [#allocation9], 256
    $region37: #{tpu_custom_call.1} parent=1 // pred_fallthru
      _
    // Predicated region
    $region38: #{tpu_custom_call.1} parent=1 // pred_check
      _
    $region39: #{tpu_custom_call.1} parent=1 // pred_check_branch
      %81 = sbr.rel (0) target = $region41
    $region40: #{tpu_custom_call.1} parent=1 // pred_region
      %82 = dma.done [#allocation9], 16
    $region41: #{tpu_custom_call.1} parent=1 // pred_fallthru
      _
    %v83 = vld [vmem:[#allocation2] sm:$0xff]
    %v84 = vld [vmem:[#allocation2 + $0x8] sm:$0xff]
    %v85 = vld [vmem:[#allocation2 + $0x10] sm:$0xff]
    %v86 = vld [vmem:[#allocation2 + $0x18] sm:$0xff]
    %v87 = vld [vmem:[#allocation2 + $0x20] sm:$0xff]
    %v88 = vld [vmem:[#allocation2 + $0x28] sm:$0xff]
    %v89 = vld [vmem:[#allocation2 + $0x30] sm:$0xff]
    %v90 = vld [vmem:[#allocation2 + $0x38] sm:$0xff]
    %v91 = vadd.f32 %v83, %v84
    %92 = vadd.xlane.f32.xlu0 %v91
    %v93 = vpop.xlane.xlu0 %92
    %v94 = vadd.f32 %v85, %v86
    %95 = vadd.xlane.f32.xlu0 %v94
    %v96 = vpop.xlane.xlu0 %95
    %v97 = vadd.f32 %v87, %v88
    %98 = vadd.xlane.f32.xlu0 %v97
    %v99 = vpop.xlane.xlu0 %98
    %v100 = vadd.f32 %v89, %v90
    %101 = vadd.xlane.f32.xlu0 %v100
    %v102 = vpop.xlane.xlu0 %101
    %v103 = vmul.f32 %v93, 0.00390625
    %v104 = vmul.f32 %v96, 0.00390625
    %v105 = vmul.f32 %v99, 0.00390625
    %v106 = vmul.f32 %v102, 0.00390625
    %v107 = vld [vmem:[#allocation5] sm:$0x3]
    %v109 = vlaneseq
    %v110 = vshrl.u32 %v109, 7
    %v111 = vsub.s32 0, %v110
    %v112 = vrot.slane %v107, %v111
    %114 = vbcast.lane.b32.xlu0 %v112, 256
    %v115 = vpop.permute.xlu0 %114
    %s117 = sor.u32 256, 8
    %118 = vbcast.lane.b32.xlu0 %v112, %s117
    %v119 = vpop.permute.xlu0 %118
    %v120 = vlaneseq
    %v121 = vshrl.u32 %v120, 7
    %v122 = vsub.s32 1, %v121
    %v123 = vrot.slane %v107, %v122
    %125 = vbcast.lane.b32.xlu0 %v123, 256
    %v126 = vpop.permute.xlu0 %125
    %s128 = sor.u32 256, 8
    %129 = vbcast.lane.b32.xlu0 %v123, %s128
    %v130 = vpop.permute.xlu0 %129
    %v135 = vmul.f32 %v103, %v115
    %v136 = vmul.f32 %v104, %v119
    %v137 = vmul.f32 %v103, %v126
    %v138 = vmul.f32 %v104, %v130
    %v139 = vmul.f32 %v105, %v115
    %v140 = vmul.f32 %v106, %v119
    %v141 = vmul.f32 %v105, %v126
    %v142 = vmul.f32 %v106, %v130
    %151 = vset.pattern.permute.xlu0 0
    %152 = vperm.xlu0 %151, %v135
    %v153 = vpop.permute.xlu0 %152
    %154 = vset.pattern.permute.xlu0 0
    %155 = vperm.xlu0 %154, %v136
    %v156 = vpop.permute.xlu0 %155
    %157 = vset.pattern.permute.xlu0 0
    %158 = vperm.xlu0 %157, %v137
    %v159 = vpop.permute.xlu0 %158
    %160 = vset.pattern.permute.xlu0 0
    %161 = vperm.xlu0 %160, %v138
    %v162 = vpop.permute.xlu0 %161
    %163 = vset.pattern.permute.xlu0 0
    %164 = vperm.xlu0 %163, %v139
    %v165 = vpop.permute.xlu0 %164
    %166 = vset.pattern.permute.xlu0 0
    %167 = vperm.xlu0 %166, %v140
    %v168 = vpop.permute.xlu0 %167
    %169 = vset.pattern.permute.xlu0 0
    %170 = vperm.xlu0 %169, %v141
    %v171 = vpop.permute.xlu0 %170
    %172 = vset.pattern.permute.xlu0 0
    %173 = vperm.xlu0 %172, %v142
    %v174 = vpop.permute.xlu0 %173
    %v175 = vlaneseq
    %v176 = vand.u32 %v175, 127
    %v177 = vlaneseq
    %v178 = vshrl.u32 %v177, 7
    %v179 = vsub.s32 %v176, %v178
    %v180 = vrot.slane %v153, %v179
    %v181 = vadd.s32 %v176, 4294967288
    %v182 = vlaneseq
    %v183 = vshrl.u32 %v182, 7
    %v184 = vsub.s32 %v181, %v183
    %v185 = vrot.slane %v156, %v184
    %vm186 = vcmask 130112
    %v187 = vsel %vm186, %v185, %v180
    %v188 = vlaneseq
    %v189 = vshrl.u32 %v188, 7
    %v190 = vsub.s32 %v176, %v189
    %v191 = vrot.slane %v159, %v190
    %v192 = vlaneseq
    %v193 = vshrl.u32 %v192, 7
    %v194 = vsub.s32 %v181, %v193
    %v195 = vrot.slane %v162, %v194
    %v196 = vsel %vm186, %v195, %v191
    %v197 = vlaneseq
    %v198 = vshrl.u32 %v197, 7
    %v199 = vsub.s32 %v176, %v198
    %v200 = vrot.slane %v165, %v199
    %v201 = vlaneseq
    %v202 = vshrl.u32 %v201, 7
    %v203 = vsub.s32 %v181, %v202
    %v204 = vrot.slane %v168, %v203
    %v205 = vsel %vm186, %v204, %v200
    %v206 = vlaneseq
    %v207 = vshrl.u32 %v206, 7
    %v208 = vsub.s32 %v176, %v207
    %v209 = vrot.slane %v171, %v208
    %v210 = vlaneseq
    %v211 = vshrl.u32 %v210, 7
    %v212 = vsub.s32 %v181, %v211
    %v213 = vrot.slane %v174, %v212
    %v214 = vsel %vm186, %v213, %v209
    %vm215 = vcmask 1041409
    %v216 = vsel %vm215, %v196, %v187
    %v217 = vsel %vm215, %v214, %v205
    %vm220 = vcmask 123904
    %v221 = vsel %vm220, %v216, 0.0
    %222 = vadd.xlane.f32.xlu0 %v221
    %v223 = vpop.xlane.xlu0 %222
    %v224 = vsel %vm220, %v217, 0.0
    %225 = vadd.xlane.f32.xlu0 %v224
    %v226 = vpop.xlane.xlu0 %225
    %v227 = vld [vmem:[#allocation7] sm:$0x1]
    %v229 = vlaneseq
    %v230 = vshrl.u32 %v229, 7
    %v231 = vsub.s32 0, %v230
    %v232 = vrot.slane %v227, %v231
    %234 = vbcast.lane.b32.xlu0 %v232, 256
    %v235 = vpop.permute.xlu0 %234
    %v237 = vadd.f32 %v223, %v235
    %v238 = vadd.f32 %v226, %v235
    %v239 = vmax.f32 %v237, 0.0
    %v240 = vmax.f32 %v238, 0.0
    %v241 = vld [vmem:[#allocation8] sm:$0xff]
    %v242 = vld [vmem:[#allocation8 + $0x8] sm:$0xff]
    %v245 = vlaneseq
    %v246 = vshrl.u32 %v245, 7
    %v247 = vsub.s32 0, %v246
    %v248 = vrot.slane %v241, %v247
    %250 = vbcast.lane.b32.xlu0 %v248, 256
    %v251 = vpop.permute.xlu0 %250
    %v252 = vlaneseq
    %v253 = vshrl.u32 %v252, 7
    %v254 = vsub.s32 1, %v253
    %v255 = vrot.slane %v241, %v254
    %257 = vbcast.lane.b32.xlu0 %v255, 256
    %v258 = vpop.permute.xlu0 %257
    %v259 = vlaneseq
    %v260 = vshrl.u32 %v259, 7
    %v261 = vsub.s32 2, %v260
    %v262 = vrot.slane %v241, %v261
    %264 = vbcast.lane.b32.xlu0 %v262, 256
    %v265 = vpop.permute.xlu0 %264
    %v266 = vlaneseq
    %v267 = vshrl.u32 %v266, 7
    %v268 = vsub.s32 3, %v267
    %v269 = vrot.slane %v241, %v268
    %271 = vbcast.lane.b32.xlu0 %v269, 256
    %v272 = vpop.permute.xlu0 %271
    %v273 = vlaneseq
    %v274 = vshrl.u32 %v273, 7
    %v275 = vsub.s32 4, %v274
    %v276 = vrot.slane %v241, %v275
    %278 = vbcast.lane.b32.xlu0 %v276, 256
    %v279 = vpop.permute.xlu0 %278
    %v280 = vlaneseq
    %v281 = vshrl.u32 %v280, 7
    %v282 = vsub.s32 5, %v281
    %v283 = vrot.slane %v241, %v282
    %285 = vbcast.lane.b32.xlu0 %v283, 256
    %v286 = vpop.permute.xlu0 %285
    %v287 = vlaneseq
    %v288 = vshrl.u32 %v287, 7
    %v289 = vsub.s32 6, %v288
    %v290 = vrot.slane %v241, %v289
    %292 = vbcast.lane.b32.xlu0 %v290, 256
    %v293 = vpop.permute.xlu0 %292
    %v294 = vlaneseq
    %v295 = vshrl.u32 %v294, 7
    %v296 = vsub.s32 7, %v295
    %v297 = vrot.slane %v241, %v296
    %299 = vbcast.lane.b32.xlu0 %v297, 256
    %v300 = vpop.permute.xlu0 %299
    %v301 = vlaneseq
    %v302 = vshrl.u32 %v301, 7
    %v303 = vsub.s32 0, %v302
    %v304 = vrot.slane %v242, %v303
    %306 = vbcast.lane.b32.xlu0 %v304, 256
    %v307 = vpop.permute.xlu0 %306
    %v308 = vlaneseq
    %v309 = vshrl.u32 %v308, 7
    %v310 = vsub.s32 1, %v309
    %v311 = vrot.slane %v242, %v310
    %313 = vbcast.lane.b32.xlu0 %v311, 256
    %v314 = vpop.permute.xlu0 %313
    %v315 = vlaneseq
    %v316 = vshrl.u32 %v315, 7
    %v317 = vsub.s32 2, %v316
    %v318 = vrot.slane %v242, %v317
    %320 = vbcast.lane.b32.xlu0 %v318, 256
    %v321 = vpop.permute.xlu0 %320
    %v322 = vlaneseq
    %v323 = vshrl.u32 %v322, 7
    %v324 = vsub.s32 3, %v323
    %v325 = vrot.slane %v242, %v324
    %327 = vbcast.lane.b32.xlu0 %v325, 256
    %v328 = vpop.permute.xlu0 %327
    %v329 = vlaneseq
    %v330 = vshrl.u32 %v329, 7
    %v331 = vsub.s32 4, %v330
    %v332 = vrot.slane %v242, %v331
    %334 = vbcast.lane.b32.xlu0 %v332, 256
    %v335 = vpop.permute.xlu0 %334
    %v336 = vlaneseq
    %v337 = vshrl.u32 %v336, 7
    %v338 = vsub.s32 5, %v337
    %v339 = vrot.slane %v242, %v338
    %341 = vbcast.lane.b32.xlu0 %v339, 256
    %v342 = vpop.permute.xlu0 %341
    %v343 = vlaneseq
    %v344 = vshrl.u32 %v343, 7
    %v345 = vsub.s32 6, %v344
    %v346 = vrot.slane %v242, %v345
    %348 = vbcast.lane.b32.xlu0 %v346, 256
    %v349 = vpop.permute.xlu0 %348
    %v350 = vlaneseq
    %v351 = vshrl.u32 %v350, 7
    %v352 = vsub.s32 7, %v351
    %v353 = vrot.slane %v242, %v352
    %355 = vbcast.lane.b32.xlu0 %v353, 256
    %v356 = vpop.permute.xlu0 %355
    %v373 = vmul.f32 %v239, %v251
    %v374 = vmul.f32 %v239, %v258
    %v375 = vmul.f32 %v239, %v265
    %v376 = vmul.f32 %v239, %v272
    %v377 = vmul.f32 %v239, %v279
    %v378 = vmul.f32 %v239, %v286
    %v379 = vmul.f32 %v239, %v293
    %v380 = vmul.f32 %v239, %v300
    %v381 = vmul.f32 %v239, %v307
    %v382 = vmul.f32 %v239, %v314
    %v383 = vmul.f32 %v239, %v321
    %v384 = vmul.f32 %v239, %v328
    %v385 = vmul.f32 %v239, %v335
    %v386 = vmul.f32 %v239, %v342
    %v387 = vmul.f32 %v239, %v349
    %v388 = vmul.f32 %v239, %v356
    %v389 = vmul.f32 %v240, %v251
    %v390 = vmul.f32 %v240, %v258
    %v391 = vmul.f32 %v240, %v265
    %v392 = vmul.f32 %v240, %v272
    %v393 = vmul.f32 %v240, %v279
    %v394 = vmul.f32 %v240, %v286
    %v395 = vmul.f32 %v240, %v293
    %v396 = vmul.f32 %v240, %v300
    %v397 = vmul.f32 %v240, %v307
    %v398 = vmul.f32 %v240, %v314
    %v399 = vmul.f32 %v240, %v321
    %v400 = vmul.f32 %v240, %v328
    %v401 = vmul.f32 %v240, %v335
    %v402 = vmul.f32 %v240, %v342
    %v403 = vmul.f32 %v240, %v349
    %v404 = vmul.f32 %v240, %v356
    %437 = vset.pattern.permute.xlu0 0
    %438 = vperm.xlu0 %437, %v373
    %v439 = vpop.permute.xlu0 %438
    %440 = vset.pattern.permute.xlu0 0
    %441 = vperm.xlu0 %440, %v374
    %v442 = vpop.permute.xlu0 %441
    %443 = vset.pattern.permute.xlu0 0
    %444 = vperm.xlu0 %443, %v375
    %v445 = vpop.permute.xlu0 %444
    %446 = vset.pattern.permute.xlu0 0
    %447 = vperm.xlu0 %446, %v376
    %v448 = vpop.permute.xlu0 %447
    %449 = vset.pattern.permute.xlu0 0
    %450 = vperm.xlu0 %449, %v377
    %v451 = vpop.permute.xlu0 %450
    %452 = vset.pattern.permute.xlu0 0
    %453 = vperm.xlu0 %452, %v378
    %v454 = vpop.permute.xlu0 %453
    %455 = vset.pattern.permute.xlu0 0
    %456 = vperm.xlu0 %455, %v379
    %v457 = vpop.permute.xlu0 %456
    %458 = vset.pattern.permute.xlu0 0
    %459 = vperm.xlu0 %458, %v380
    %v460 = vpop.permute.xlu0 %459
    %461 = vset.pattern.permute.xlu0 0
    %462 = vperm.xlu0 %461, %v381
    %v463 = vpop.permute.xlu0 %462
    %464 = vset.pattern.permute.xlu0 0
    %465 = vperm.xlu0 %464, %v382
    %v466 = vpop.permute.xlu0 %465
    %467 = vset.pattern.permute.xlu0 0
    %468 = vperm.xlu0 %467, %v383
    %v469 = vpop.permute.xlu0 %468
    %470 = vset.pattern.permute.xlu0 0
    %471 = vperm.xlu0 %470, %v384
    %v472 = vpop.permute.xlu0 %471
    %473 = vset.pattern.permute.xlu0 0
    %474 = vperm.xlu0 %473, %v385
    %v475 = vpop.permute.xlu0 %474
    %476 = vset.pattern.permute.xlu0 0
    %477 = vperm.xlu0 %476, %v386
    %v478 = vpop.permute.xlu0 %477
    %479 = vset.pattern.permute.xlu0 0
    %480 = vperm.xlu0 %479, %v387
    %v481 = vpop.permute.xlu0 %480
    %482 = vset.pattern.permute.xlu0 0
    %483 = vperm.xlu0 %482, %v388
    %v484 = vpop.permute.xlu0 %483
    %485 = vset.pattern.permute.xlu0 0
    %486 = vperm.xlu0 %485, %v389
    %v487 = vpop.permute.xlu0 %486
    %488 = vset.pattern.permute.xlu0 0
    %489 = vperm.xlu0 %488, %v390
    %v490 = vpop.permute.xlu0 %489
    %491 = vset.pattern.permute.xlu0 0
    %492 = vperm.xlu0 %491, %v391
    %v493 = vpop.permute.xlu0 %492
    %494 = vset.pattern.permute.xlu0 0
    %495 = vperm.xlu0 %494, %v392
    %v496 = vpop.permute.xlu0 %495
    %497 = vset.pattern.permute.xlu0 0
    %498 = vperm.xlu0 %497, %v393
    %v499 = vpop.permute.xlu0 %498
    %500 = vset.pattern.permute.xlu0 0
    %501 = vperm.xlu0 %500, %v394
    %v502 = vpop.permute.xlu0 %501
    %503 = vset.pattern.permute.xlu0 0
    %504 = vperm.xlu0 %503, %v395
    %v505 = vpop.permute.xlu0 %504
    %506 = vset.pattern.permute.xlu0 0
    %507 = vperm.xlu0 %506, %v396
    %v508 = vpop.permute.xlu0 %507
    %509 = vset.pattern.permute.xlu0 0
    %510 = vperm.xlu0 %509, %v397
    %v511 = vpop.permute.xlu0 %510
    %512 = vset.pattern.permute.xlu0 0
    %513 = vperm.xlu0 %512, %v398
    %v514 = vpop.permute.xlu0 %513
    %515 = vset.pattern.permute.xlu0 0
    %516 = vperm.xlu0 %515, %v399
    %v517 = vpop.permute.xlu0 %516
    %518 = vset.pattern.permute.xlu0 0
    %519 = vperm.xlu0 %518, %v400
    %v520 = vpop.permute.xlu0 %519
    %521 = vset.pattern.permute.xlu0 0
    %522 = vperm.xlu0 %521, %v401
    %v523 = vpop.permute.xlu0 %522
    %524 = vset.pattern.permute.xlu0 0
    %525 = vperm.xlu0 %524, %v402
    %v526 = vpop.permute.xlu0 %525
    %527 = vset.pattern.permute.xlu0 0
    %528 = vperm.xlu0 %527, %v403
    %v529 = vpop.permute.xlu0 %528
    %530 = vset.pattern.permute.xlu0 0
    %531 = vperm.xlu0 %530, %v404
    %v532 = vpop.permute.xlu0 %531
    %v533 = vlaneseq
    %v534 = vshrl.u32 %v533, 7
    %v535 = vsub.s32 %v176, %v534
    %v536 = vrot.slane %v439, %v535
    %v537 = vlaneseq
    %v538 = vshrl.u32 %v537, 7
    %v539 = vsub.s32 %v176, %v538
    %v540 = vrot.slane %v442, %v539
    %v541 = vlaneseq
    %v542 = vshrl.u32 %v541, 7
    %v543 = vsub.s32 %v176, %v542
    %v544 = vrot.slane %v445, %v543
    %v545 = vlaneseq
    %v546 = vshrl.u32 %v545, 7
    %v547 = vsub.s32 %v176, %v546
    %v548 = vrot.slane %v448, %v547
    %v549 = vlaneseq
    %v550 = vshrl.u32 %v549, 7
    %v551 = vsub.s32 %v176, %v550
    %v552 = vrot.slane %v451, %v551
    %v553 = vlaneseq
    %v554 = vshrl.u32 %v553, 7
    %v555 = vsub.s32 %v176, %v554
    %v556 = vrot.slane %v454, %v555
    %v557 = vlaneseq
    %v558 = vshrl.u32 %v557, 7
    %v559 = vsub.s32 %v176, %v558
    %v560 = vrot.slane %v457, %v559
    %v561 = vlaneseq
    %v562 = vshrl.u32 %v561, 7
    %v563 = vsub.s32 %v176, %v562
    %v564 = vrot.slane %v460, %v563
    %v565 = vlaneseq
    %v566 = vshrl.u32 %v565, 7
    %v567 = vsub.s32 %v176, %v566
    %v568 = vrot.slane %v463, %v567
    %v569 = vlaneseq
    %v570 = vshrl.u32 %v569, 7
    %v571 = vsub.s32 %v176, %v570
    %v572 = vrot.slane %v466, %v571
    %v573 = vlaneseq
    %v574 = vshrl.u32 %v573, 7
    %v575 = vsub.s32 %v176, %v574
    %v576 = vrot.slane %v469, %v575
    %v577 = vlaneseq
    %v578 = vshrl.u32 %v577, 7
    %v579 = vsub.s32 %v176, %v578
    %v580 = vrot.slane %v472, %v579
    %v581 = vlaneseq
    %v582 = vshrl.u32 %v581, 7
    %v583 = vsub.s32 %v176, %v582
    %v584 = vrot.slane %v475, %v583
    %v585 = vlaneseq
    %v586 = vshrl.u32 %v585, 7
    %v587 = vsub.s32 %v176, %v586
    %v588 = vrot.slane %v478, %v587
    %v589 = vlaneseq
    %v590 = vshrl.u32 %v589, 7
    %v591 = vsub.s32 %v176, %v590
    %v592 = vrot.slane %v481, %v591
    %v593 = vlaneseq
    %v594 = vshrl.u32 %v593, 7
    %v595 = vsub.s32 %v176, %v594
    %v596 = vrot.slane %v484, %v595
    %v597 = vlaneseq
    %v598 = vshrl.u32 %v597, 7
    %v599 = vsub.s32 %v176, %v598
    %v600 = vrot.slane %v487, %v599
    %v601 = vlaneseq
    %v602 = vshrl.u32 %v601, 7
    %v603 = vsub.s32 %v176, %v602
    %v604 = vrot.slane %v490, %v603
    %v605 = vlaneseq
    %v606 = vshrl.u32 %v605, 7
    %v607 = vsub.s32 %v176, %v606
    %v608 = vrot.slane %v493, %v607
    %v609 = vlaneseq
    %v610 = vshrl.u32 %v609, 7
    %v611 = vsub.s32 %v176, %v610
    %v612 = vrot.slane %v496, %v611
    %v613 = vlaneseq
    %v614 = vshrl.u32 %v613, 7
    %v615 = vsub.s32 %v176, %v614
    %v616 = vrot.slane %v499, %v615
    %v617 = vlaneseq
    %v618 = vshrl.u32 %v617, 7
    %v619 = vsub.s32 %v176, %v618
    %v620 = vrot.slane %v502, %v619
    %v621 = vlaneseq
    %v622 = vshrl.u32 %v621, 7
    %v623 = vsub.s32 %v176, %v622
    %v624 = vrot.slane %v505, %v623
    %v625 = vlaneseq
    %v626 = vshrl.u32 %v625, 7
    %v627 = vsub.s32 %v176, %v626
    %v628 = vrot.slane %v508, %v627
    %v629 = vlaneseq
    %v630 = vshrl.u32 %v629, 7
    %v631 = vsub.s32 %v176, %v630
    %v632 = vrot.slane %v511, %v631
    %v633 = vlaneseq
    %v634 = vshrl.u32 %v633, 7
    %v635 = vsub.s32 %v176, %v634
    %v636 = vrot.slane %v514, %v635
    %v637 = vlaneseq
    %v638 = vshrl.u32 %v637, 7
    %v639 = vsub.s32 %v176, %v638
    %v640 = vrot.slane %v517, %v639
    %v641 = vlaneseq
    %v642 = vshrl.u32 %v641, 7
    %v643 = vsub.s32 %v176, %v642
    %v644 = vrot.slane %v520, %v643
    %v645 = vlaneseq
    %v646 = vshrl.u32 %v645, 7
    %v647 = vsub.s32 %v176, %v646
    %v648 = vrot.slane %v523, %v647
    %v649 = vlaneseq
    %v650 = vshrl.u32 %v649, 7
    %v651 = vsub.s32 %v176, %v650
    %v652 = vrot.slane %v526, %v651
    %v653 = vlaneseq
    %v654 = vshrl.u32 %v653, 7
    %v655 = vsub.s32 %v176, %v654
    %v656 = vrot.slane %v529, %v655
    %v657 = vlaneseq
    %v658 = vshrl.u32 %v657, 7
    %v659 = vsub.s32 %v176, %v658
    %v660 = vrot.slane %v532, %v659
    %v661 = vsel %vm215, %v540, %v536
    %vm662 = vcmask 1042434
    %v663 = vsel %vm662, %v544, %v661
    %vm664 = vcmask 1043459
    %v665 = vsel %vm664, %v548, %v663
    %vm666 = vcmask 1044484
    %v667 = vsel %vm666, %v552, %v665
    %vm668 = vcmask 1045509
    %v669 = vsel %vm668, %v556, %v667
    %vm670 = vcmask 1046534
    %v671 = vsel %vm670, %v560, %v669
    %vm672 = vcmask 1047559
    %v673 = vsel %vm672, %v564, %v671
    %v674 = vsel %vm215, %v572, %v568
    %v675 = vsel %vm662, %v576, %v674
    %v676 = vsel %vm664, %v580, %v675
    %v677 = vsel %vm666, %v584, %v676
    %v678 = vsel %vm668, %v588, %v677
    %v679 = vsel %vm670, %v592, %v678
    %v680 = vsel %vm672, %v596, %v679
    %v681 = vsel %vm215, %v604, %v600
    %v682 = vsel %vm662, %v608, %v681
    %v683 = vsel %vm664, %v612, %v682
    %v684 = vsel %vm666, %v616, %v683
    %v685 = vsel %vm668, %v620, %v684
    %v686 = vsel %vm670, %v624, %v685
    %v687 = vsel %vm672, %v628, %v686
    %v688 = vsel %vm215, %v636, %v632
    %v689 = vsel %vm662, %v640, %v688
    %v690 = vsel %vm664, %v644, %v689
    %v691 = vsel %vm666, %v648, %v690
    %v692 = vsel %vm668, %v652, %v691
    %v693 = vsel %vm670, %v656, %v692
    %v694 = vsel %vm672, %v660, %v693
    %vm699 = vcmask 15360
    %v700 = vsel %vm699, %v673, 0.0
    %701 = vadd.xlane.f32.xlu0 %v700
    %v702 = vpop.xlane.xlu0 %701
    %v703 = vsel %vm699, %v680, 0.0
    %704 = vadd.xlane.f32.xlu0 %v703
    %v705 = vpop.xlane.xlu0 %704
    %v706 = vsel %vm699, %v687, 0.0
    %707 = vadd.xlane.f32.xlu0 %v706
    %v708 = vpop.xlane.xlu0 %707
    %v709 = vsel %vm699, %v694, 0.0
    %710 = vadd.xlane.f32.xlu0 %v709
    %v711 = vpop.xlane.xlu0 %710
    %v712 = vld [vmem:[#allocation10] sm:$0x1]
    %v714 = vlaneseq
    %v715 = vshrl.u32 %v714, 7
    %v716 = vsub.s32 0, %v715
    %v717 = vrot.slane %v712, %v716
    %719 = vbcast.lane.b32.xlu0 %v717, 256
    %v720 = vpop.permute.xlu0 %719
    %s722 = sor.u32 256, 8
    %723 = vbcast.lane.b32.xlu0 %v717, %s722
    %v724 = vpop.permute.xlu0 %723
    %v727 = vadd.f32 %v702, %v720
    %v728 = vadd.f32 %v705, %v724
    %v729 = vadd.f32 %v708, %v720
    %v730 = vadd.f32 %v711, %v724
    %v731 = vxor.u32 %v727, 2147483648
    %v732 = vxor.u32 %v728, 2147483648
    %v733 = vxor.u32 %v729, 2147483648
    %v734 = vxor.u32 %v730, 2147483648
    %v735 = vmul.f32 %v731, 1.442695
    %v736 = vpow.pop %v735
    %v737 = vmul.f32 %v732, 1.442695
    %v738 = vpow.pop %v737
    %v739 = vmul.f32 %v733, 1.442695
    %v740 = vpow.pop %v739
    %v741 = vmul.f32 %v734, 1.442695
    %v742 = vpow.pop %v741
    %v743 = vadd.f32 %v736, 1.0
    %v744 = vadd.f32 %v738, 1.0
    %v745 = vadd.f32 %v740, 1.0
    %v746 = vadd.f32 %v742, 1.0
    %v747 = vrcp.pop %v743
    %v748 = vmul.f32 1.0, %v747
    %v749 = vrcp.pop %v744
    %v750 = vmul.f32 1.0, %v749
    %v751 = vrcp.pop %v745
    %v752 = vmul.f32 1.0, %v751
    %v753 = vrcp.pop %v746
    %v754 = vmul.f32 1.0, %v753
    %756 = vset.pattern.permute.xlu0 0
    %757 = vperm.xlu0 %756, %v748
    %v758 = vpop.permute.xlu0 %757
    %761 = vset.pattern.permute.xlu0 0
    %762 = vperm.xlu0 %761, %v750
    %v763 = vpop.permute.xlu0 %762
    %766 = vset.pattern.permute.xlu0 0
    %767 = vperm.xlu0 %766, %v752
    %v768 = vpop.permute.xlu0 %767
    %771 = vset.pattern.permute.xlu0 0
    %772 = vperm.xlu0 %771, %v754
    %v773 = vpop.permute.xlu0 %772
    %v775 = vmul.f32 %v83, %v758
    %v776 = vmul.f32 %v84, %v758
    %v777 = vmul.f32 %v85, %v763
    %v778 = vmul.f32 %v86, %v763
    %v779 = vmul.f32 %v87, %v768
    %v780 = vmul.f32 %v88, %v768
    %v781 = vmul.f32 %v89, %v773
    %v782 = vmul.f32 %v90, %v773
    %783 = vst [vmem:[#allocation11] sm:$0xff] %v775
    %784 = vst [vmem:[#allocation11 + $0x8] sm:$0xff] %v776
    %785 = vst [vmem:[#allocation11 + $0x10] sm:$0xff] %v777
    %786 = vst [vmem:[#allocation11 + $0x18] sm:$0xff] %v778
    %787 = vst [vmem:[#allocation11 + $0x20] sm:$0xff] %v779
    %788 = vst [vmem:[#allocation11 + $0x28] sm:$0xff] %v780
    %789 = vst [vmem:[#allocation11 + $0x30] sm:$0xff] %v781
    %790 = vst [vmem:[#allocation11 + $0x38] sm:$0xff] %v782
    // Predicated region
    $region42: #{tpu_custom_call.1} parent=1 // pred_check
      _
    $region43: #{tpu_custom_call.1} parent=1 // pred_check_branch
      %792 = sbr.rel (0) target = $region45
    $region44: #{tpu_custom_call.1} parent=1 // pred_region
      %s794 = ssub.s32 1024, 1024
      %795 = vsyncadd [#allocation4], %s794
      %s796 = sshll.u32 [#allocation11], 4
      %s797 = int_to_ptr.vmem [resolvable:$true] %s796
      %802 = dma.vmem_to_hbm [thread:$0]  %s797, 1024, %s5, [#allocation4], 256, 256, 16
    $region45: #{tpu_custom_call.1} parent=1 // pred_fallthru
      _
    // Predicated region
    $region46: #{tpu_custom_call.1} parent=1 // pred_check
      _
    $region47: #{tpu_custom_call.1} parent=1 // pred_check_branch
      %804 = sbr.rel (0) target = $region49
    $region48: #{tpu_custom_call.1} parent=1 // pred_region
      %805 = dma.done [#allocation4], 1024
    $region49: #{tpu_custom_call.1} parent=1 // pred_fallthru
      _
    %806 = vsyncpa [#allocation3], 1
    %807 = vsyncpa [#allocation6], 1
    %808 = vsyncpa [#allocation9], 1
    %809 = vsyncpa [#allocation4], 1

</llo_original>
